<compile_context>
chip_gen: v7x
topology: tpu7x:2x2x1
jax: 0.10.0
libtpu: 0.0.40
codegen_flags: <defaults>
</compile_context>

<pallas_src>
import functools

import jax
import jax.numpy as jnp
from jax.experimental import pallas as pl
from jax.experimental.pallas import tpu as pltpu


def _round_up(x, m):
    return ((x + m - 1) // m) * m


# --------------------------------------------------------------------------
# Kernel
# --------------------------------------------------------------------------
def _dueling_q_kernel(x_ref, w_ref, b_ref, out_ref, *, S_pad, H1, H2, A):
    """One fused forward tile.

    x_ref   : (tb, S_pad)              batch tile of (zero-padded) states
    w_ref   : (S_pad+H1+H2, WPAD)      packed weight slab (rows: W1c|W2c|W3c)
    b_ref   : (3, WPAD)                packed bias rows (b1c, b2c, b3c)
    out_ref : (tb, 128)                lane-dense Q block (cols 0:A valid)
    """
    cdt = w_ref.dtype                       # compute dtype (f32 or bf16)
    x = x_ref[...]

    # ---- layer 1: state -> fused hidden (value | advantage), width H1 ----
    w1 = w_ref[0:S_pad, 0:H1]
    h1 = jnp.maximum(
        jnp.dot(x, w1, preferred_element_type=jnp.float32)
        + b_ref[0:1, 0:H1].astype(jnp.float32),
        0.0,
    ).astype(cdt)

    # ---- layer 2: block-diagonal, width H2 ----
    r0 = S_pad
    w2 = w_ref[r0:r0 + H1, 0:H2]
    h2 = jnp.maximum(
        jnp.dot(h1, w2, preferred_element_type=jnp.float32)
        + b_ref[1:2, 0:H2].astype(jnp.float32),
        0.0,
    ).astype(cdt)

    # ---- layer 3: block-diagonal, full 128-lane tile width ----
    #   lanes 0..A-1 = advantage head, lane A = value head, rest = zeros.
    r1 = S_pad + H1
    w3 = w_ref[r1:r1 + H2, :]                                   # (H2, WPAD)
    h3 = (jnp.dot(h2, w3, preferred_element_type=jnp.float32)
          + b_ref[2:3, :].astype(jnp.float32))                  # (tb, WPAD) f32

    value = h3[:, A:A + 1]                                      # (tb, 1)
    lane = jax.lax.broadcasted_iota(jnp.int32, h3.shape, 1)
    adv_sum = jnp.sum(jnp.where(lane < A, h3, 0.0), axis=1, keepdims=True)
    adv_mean = adv_sum * (1.0 / A)                              # exact for A

    # Q = value + (advantage - adv_mean); lanes >= A are garbage and are
    # sliced away in the wrapper.  Full 128-lane store (no masked vst).
    q = h3[:, 0:128] + (value - adv_mean)
    out_ref[...] = q.astype(out_ref.dtype)


# --------------------------------------------------------------------------
# Parameter packing (host side, done ONCE at init)
# --------------------------------------------------------------------------
def pack_params(p, state_size, action_size, compute_dtype=jnp.bfloat16):
    """Pack the 12 per-layer tensors into one weight slab + one bias slab.

    Layout (rows):
      [0      : S      ] W1c = [vw1 | aw1]                    (cols 0:2*fc1)
      [S_pad  : +2*fc1 ] W2c = blockdiag(vw2, aw2)            (cols 0:2*fc2)
      [S_pad+H1 : +2*fc2] W3c: aw3 -> cols 0:A, vw3 -> col A
    """
    fc1 = p["vw1"].shape[1]
    fc2 = p["vw2"].shape[1]
    S, A = state_size, action_size
    S_pad = _round_up(S, 8)
    H1 = _round_up(2 * fc1, 128)
    H2 = _round_up(2 * fc2, 128)
    WPAD = max(H1, H2, 128)
    assert A + 1 <= 128, "action_size (+ value column) must fit in one lane tile"

    rows = S_pad + H1 + H2
    w = jnp.zeros((rows, WPAD), jnp.float32)
    # layer 1: concatenate columns  [vw1 | aw1]
    w = w.at[0:S, 0:fc1].set(p["vw1"])
    w = w.at[0:S, fc1:2 * fc1].set(p["aw1"])
    # layer 2: block diagonal
    r0 = S_pad
    w = w.at[r0:r0 + fc1, 0:fc2].set(p["vw2"])
    w = w.at[r0 + fc1:r0 + 2 * fc1, fc2:2 * fc2].set(p["aw2"])
    # layer 3: advantage -> lanes 0:A, value -> lane A  (lane-aligned output)
    r1 = S_pad + H1
    w = w.at[r1 + fc2:r1 + 2 * fc2, 0:A].set(p["aw3"])
    w = w.at[r1:r1 + fc2, A:A + 1].set(p["vw3"])

    b = jnp.zeros((3, WPAD), jnp.float32)
    b = b.at[0, 0:fc1].set(p["vb1"][0]).at[0, fc1:2 * fc1].set(p["ab1"][0])
    b = b.at[1, 0:fc2].set(p["vb2"][0]).at[1, fc2:2 * fc2].set(p["ab2"][0])
    b = b.at[2, 0:A].set(p["ab3"][0]).at[2, A:A + 1].set(p["vb3"][0])

    dims = dict(S=S, S_pad=S_pad, H1=H1, H2=H2, A=A, WPAD=WPAD)
    return w.astype(compute_dtype), b.astype(compute_dtype), dims


# --------------------------------------------------------------------------
# Wrapper
# --------------------------------------------------------------------------
def dueling_q_forward(state, w_slab, b_slab, dims, *, block_b=1024):
    """state: (B, S) float32.  w_slab/b_slab/dims from pack_params (done once).

    Compute dtype is taken from the packed slabs (bf16 recommended for
    inference on v5e/v6e/v7x; f32 for exact parity with the reference).
    Accumulation / bias / ReLU stay f32 either way.
    """
    B, S = state.shape
    S_pad, H1, H2, A = dims["S_pad"], dims["H1"], dims["H2"], dims["A"]
    compute_dtype = w_slab.dtype

    # Batch tiling: for small/medium B aim for ~2 tiles (v7x has 2 TCs);
    # for large B use 1024-row tiles.  Tiles are multiples of 8 sublanes.
    if B <= block_b:
        tb = max(8, _round_up(pl.cdiv(B, 2), 8))
    else:
        tb = block_b
    B_pad = _round_up(B, tb)
    grid = (B_pad // tb,)

    # Zero-pad batch rows / state columns so every block is fully in-bounds
    # and the K dimension is sublane-aligned.
    if (B_pad, S_pad) == (B, S) and state.dtype == compute_dtype:
        x = state
    else:
        x = jnp.zeros((B_pad, S_pad), compute_dtype).at[:B, :S].set(
            state.astype(compute_dtype))

    kernel = functools.partial(
        _dueling_q_kernel, S_pad=S_pad, H1=H1, H2=H2, A=A)

    out_full = pl.pallas_call(
        kernel,
        out_shape=jax.ShapeDtypeStruct((B_pad, 128), jnp.float32),
        grid_spec=pltpu.PrefetchScalarGridSpec(
            num_scalar_prefetch=0,
            grid=grid,
            in_specs=[
                pl.BlockSpec((tb, S_pad), lambda i: (i, 0)),      # batch tile
                pl.BlockSpec(w_slab.shape, lambda i: (0, 0)),     # resident W
                pl.BlockSpec(b_slab.shape, lambda i: (0, 0)),     # resident b
            ],
            out_specs=pl.BlockSpec((tb, 128), lambda i: (i, 0)),  # lane-dense
        ),
        compiler_params=pltpu.CompilerParams(
            dimension_semantics=("parallel",),                    # v7x: 2 TCs
        ),
    )(x, w_slab, b_slab)

    # NOTE: PyTorch's .squeeze(0) on value is a numerical no-op for this
    # broadcast, so the result is (B, A) for every batch size.
    return out_full[:B, :A]


# --------------------------------------------------------------------------
# Init + plain-JAX reference (for validation)
# --------------------------------------------------------------------------
def init_params(key, state_size, action_size, fc1_units=64, fc2_units=64):
    """PyTorch-style init: U(-1/sqrt(fan_in), 1/sqrt(fan_in))."""
    def linear(k, fan_in, fan_out):
        kw, kb = jax.random.split(k)
        bound = 1.0 / jnp.sqrt(fan_in)
        w = jax.random.uniform(kw, (fan_in, fan_out), jnp.float32, -bound, bound)
        b = jax.random.uniform(kb, (1, fan_out), jnp.float32, -bound, bound)
        return w, b

    keys = jax.random.split(key, 6)
    vw1, vb1 = linear(keys[0], state_size, fc1_units)
    vw2, vb2 = linear(keys[1], fc1_units, fc2_units)
    vw3, vb3 = linear(keys[2], fc2_units, 1)
    aw1, ab1 = linear(keys[3], state_size, fc1_units)
    aw2, ab2 = linear(keys[4], fc1_units, fc2_units)
    aw3, ab3 = linear(keys[5], fc2_units, action_size)
    return dict(
        vw1=vw1, vb1=vb1, vw2=vw2, vb2=vb2, vw3=vw3, vb3=vb3,
        aw1=aw1, ab1=ab1, aw2=aw2, ab2=ab2, aw3=aw3, ab3=ab3,
    )


def reference_forward(state, p):
    """Mirrors the PyTorch module (for validation)."""
    relu = lambda z: jnp.maximum(z, 0.0)
    vh = relu(relu(state @ p["vw1"] + p["vb1"]) @ p["vw2"] + p["vb2"])
    value = vh @ p["vw3"] + p["vb3"]                     # (B, 1)
    ah = relu(relu(state @ p["aw1"] + p["ab1"]) @ p["aw2"] + p["ab2"])
    advantage = ah @ p["aw3"] + p["ab3"]                 # (B, A)
    adv_mean = jnp.mean(advantage, axis=1, keepdims=True)
    return value + (advantage - adv_mean)


if __name__ == "__main__":
    state_size = 16
    action_size = 8
    batch = 2

    key = jax.random.PRNGKey(0)
    k_params, k_state = jax.random.split(key)

    params = init_params(k_params, state_size, action_size)
    state = jax.random.normal(k_state, (batch, state_size), jnp.float32)
    ref = reference_forward(state, params)

    # ---- f32 path: exact parity with the reference ----
    w32, b32, dims32 = pack_params(params, state_size, action_size,
                                   compute_dtype=jnp.float32)
    out32 = jax.block_until_ready(dueling_q_forward(state, w32, b32, dims32))
    assert out32.shape == (batch, action_size)
    assert jnp.allclose(out32, ref, atol=1e-5, rtol=1e-5), float(
        jnp.max(jnp.abs(out32 - ref)))

    # ---- bf16-operand / f32-accumulate fast path (recommended default) ----
    wbf, bbf, dimsbf = pack_params(params, state_size, action_size,
                                   compute_dtype=jnp.bfloat16)
    outbf = jax.block_until_ready(dueling_q_forward(state, wbf, bbf, dimsbf))
    assert outbf.shape == (batch, action_size)
    assert bool(jnp.all(jnp.isfinite(outbf)))
    assert jnp.allclose(outbf, ref, atol=1e-1, rtol=1e-1), float(
        jnp.max(jnp.abs(outbf - ref)))

    print("KERNEL_OK")
</pallas_src>

<mosaic_0001>
module attributes {stable_mosaic.version = 11 : i64} {
  func.func @_dueling_q_kernel(%arg0: i32, %arg1: memref<8x16xf32, #tpu.memory_space<vmem>>, %arg2: memref<272x128xf32, #tpu.memory_space<vmem>>, %arg3: memref<3x128xf32, #tpu.memory_space<vmem>>, %arg4: memref<8x128xf32, #tpu.memory_space<vmem>>) attributes {dimension_semantics = [#tpu.dimension_semantics<parallel>], iteration_bounds = array<i64: 1>, scalar_prefetch = 0 : i64, scratch_operands = 0 : i64, tpu.core_type = #tpu.core_type<tc>, window_params = [{transform_indices = @transform_0, window_bounds = array<i64: 8, 16>}, {pipeline_mode = #tpu.pipeline_mode<synchronous>, transform_indices = @transform_1, window_bounds = array<i64: 272, 128>}, {pipeline_mode = #tpu.pipeline_mode<synchronous>, transform_indices = @transform_2, window_bounds = array<i64: 3, 128>}, {transform_indices = @transform_3, window_bounds = array<i64: 8, 128>}]} {
    %c0 = arith.constant 0 : index
    %c0_0 = arith.constant 0 : index
    %0 = vector.load %arg1[%c0, %c0_0] : memref<8x16xf32, #tpu.memory_space<vmem>>, vector<8x16xf32>
    %c0_1 = arith.constant 0 : index
    %c0_2 = arith.constant 0 : index
    %1 = vector.load %arg2[%c0_1, %c0_2] : memref<272x128xf32, #tpu.memory_space<vmem>>, vector<16x128xf32>
    %cst = arith.constant dense<0.000000e+00> : vector<8x128xf32>
    %2 = tpu.matmul %0, %1, %cst {dimension_numbers = #tpu.dot_dimension_numbers<[1], [0], [0], [1], [0, 0, 1, 1], [], []>} : vector<8x16xf32>, vector<16x128xf32>, vector<8x128xf32> -> vector<8x128xf32>
    %c0_3 = arith.constant 0 : index
    %c0_4 = arith.constant 0 : index
    %3 = vector.load %arg3[%c0_3, %c0_4] : memref<3x128xf32, #tpu.memory_space<vmem>>, vector<1x128xf32>
    %4 = vector.broadcast %3 : vector<1x128xf32> to vector<8x128xf32>
    %5 = arith.addf %2, %4 : vector<8x128xf32>
    %cst_5 = arith.constant 0.000000e+00 : f32
    %6 = vector.broadcast %cst_5 : f32 to vector<8x128xf32>
    %7 = arith.maximumf %5, %6 : vector<8x128xf32>
    %c16 = arith.constant 16 : index
    %c0_6 = arith.constant 0 : index
    %8 = vector.load %arg2[%c16, %c0_6] : memref<272x128xf32, #tpu.memory_space<vmem>>, vector<128x128xf32>
    %cst_7 = arith.constant dense<0.000000e+00> : vector<8x128xf32>
    %9 = tpu.matmul %7, %8, %cst_7 {dimension_numbers = #tpu.dot_dimension_numbers<[1], [0], [0], [1], [0, 0, 1, 1], [], []>} : vector<8x128xf32>, vector<128x128xf32>, vector<8x128xf32> -> vector<8x128xf32>
    %c1 = arith.constant 1 : index
    %c0_8 = arith.constant 0 : index
    %10 = vector.load %arg3[%c1, %c0_8] : memref<3x128xf32, #tpu.memory_space<vmem>>, vector<1x128xf32>
    %11 = vector.broadcast %10 : vector<1x128xf32> to vector<8x128xf32>
    %12 = arith.addf %9, %11 : vector<8x128xf32>
    %cst_9 = arith.constant 0.000000e+00 : f32
    %13 = vector.broadcast %cst_9 : f32 to vector<8x128xf32>
    %14 = arith.maximumf %12, %13 : vector<8x128xf32>
    %c144 = arith.constant 144 : index
    %c0_10 = arith.constant 0 : index
    %15 = vector.load %arg2[%c144, %c0_10] : memref<272x128xf32, #tpu.memory_space<vmem>>, vector<128x128xf32>
    %cst_11 = arith.constant dense<0.000000e+00> : vector<8x128xf32>
    %16 = tpu.matmul %14, %15, %cst_11 {dimension_numbers = #tpu.dot_dimension_numbers<[1], [0], [0], [1], [0, 0, 1, 1], [], []>} : vector<8x128xf32>, vector<128x128xf32>, vector<8x128xf32> -> vector<8x128xf32>
    %c2 = arith.constant 2 : index
    %c0_12 = arith.constant 0 : index
    %17 = vector.load %arg3[%c2, %c0_12] : memref<3x128xf32, #tpu.memory_space<vmem>>, vector<1x128xf32>
    %18 = vector.broadcast %17 : vector<1x128xf32> to vector<8x128xf32>
    %19 = arith.addf %16, %18 : vector<8x128xf32>
    %20 = vector.extract_strided_slice %19 {offsets = [0, 8], sizes = [8, 1], strides = [1, 1]} : vector<8x128xf32> to vector<8x1xf32>
    %21 = tpu.iota {dimensions = array<i32: 1>} : vector<8x128xi32>
    %c8_i32 = arith.constant 8 : i32
    %22 = vector.broadcast %c8_i32 : i32 to vector<8x128xi32>
    %23 = arith.cmpi slt, %21, %22 : vector<8x128xi32>
    %cst_13 = arith.constant 0.000000e+00 : f32
    %24 = vector.broadcast %cst_13 : f32 to vector<8x128xf32>
    %25 = arith.select %23, %19, %24 : vector<8x128xi1>, vector<8x128xf32>
    %cst_14 = arith.constant dense<0.000000e+00> : vector<8xf32>
    %26 = vector.multi_reduction <add>, %25, %cst_14 [1] : vector<8x128xf32> to vector<8xf32>
    %27 = vector.shape_cast %26 : vector<8xf32> to vector<8x1xf32>
    %cst_15 = arith.constant 1.250000e-01 : f32
    %28 = vector.broadcast %cst_15 : f32 to vector<8x1xf32>
    %29 = arith.mulf %27, %28 : vector<8x1xf32>
    %30 = arith.subf %20, %29 : vector<8x1xf32>
    %31 = vector.broadcast %30 : vector<8x1xf32> to vector<8x128xf32>
    %32 = arith.addf %19, %31 : vector<8x128xf32>
    %c0_16 = arith.constant 0 : index
    %c0_17 = arith.constant 0 : index
    %33 = vector.load %arg4[%c0_16, %c0_17] : memref<8x128xf32, #tpu.memory_space<vmem>>, vector<8x128xf32>
    tpu.vector_store %arg4[%c0_16, %c0_17], %32 {strides = array<i32>} : memref<8x128xf32, #tpu.memory_space<vmem>>, vector<8x128xf32>,
    return
  }
  func.func @transform_0(%arg0: i32) -> (i32, i32) {
    %c0_i32 = arith.constant 0 : i32
    %c0_i32_0 = arith.constant 0 : i32
    return %arg0, %c0_i32 : i32, i32
  }
  func.func @transform_1(%arg0: i32) -> (i32, i32) {
    %c0_i32 = arith.constant 0 : i32
    %c0_i32_0 = arith.constant 0 : i32
    %c0_i32_1 = arith.constant 0 : i32
    return %c0_i32, %c0_i32_0 : i32, i32
  }
  func.func @transform_2(%arg0: i32) -> (i32, i32) {
    %c0_i32 = arith.constant 0 : i32
    %c0_i32_0 = arith.constant 0 : i32
    %c0_i32_1 = arith.constant 0 : i32
    return %c0_i32, %c0_i32_0 : i32, i32
  }
  func.func @transform_3(%arg0: i32) -> (i32, i32) {
    %c0_i32 = arith.constant 0 : i32
    %c0_i32_0 = arith.constant 0 : i32
    return %arg0, %c0_i32 : i32, i32
  }
}

</mosaic_0001>

<llo_original>
// kernel: tpu_custom_call.1
$region0: #{tpu_custom_call.1}
  #allocation0 [shape = 'u32[]', space=smem, size = 0x4, offset = 0x4, fixed_abs, tag = 'smem constant byte address 0x4 - core index']
  #allocation1 [shape = 'u32[144,128]{1,0:T(1,128)}', space=vmem, size = 0x12000, scoped, tag = 'internal scratch']
  %s0 = inlined_call_operand.hbm [shape: f32[8,16], index: 0, kind: input, shape index: {}]
  %s1 = inlined_call_operand.hbm [shape: f32[272,128], index: 1, kind: input, shape index: {}]
  %s2 = inlined_call_operand.vmem [shape: f32[3,128], index: 2, kind: input, shape index: {}]
  %s3 = inlined_call_operand.hbm [shape: f32[8,128], index: 3, kind: output, shape index: {}]
  %s4 = sld [smem:[#allocation0]]
  $region30: #{tpu_custom_call.1} parent=0
    _
  %s6 = ssub.s32 1, %s4
  %s7 = scalar_select 0, %s6, %s4
  $region1: #{tpu_custom_call.1} parent=0
    #allocation2 [shape = 'u8[4096]{0}', space=vmem, size = 0x1000, scoped, tag = 'input window, operand 0, single buffered']
    #allocation3 [shape = 's32[1]{0}', space=sflag, size = 0x4, scoped, tag = 'scoped memory for tpu_custom_call.1']
    #allocation4 [shape = 's32[1]{0}', space=sflag, size = 0x4, scoped, tag = 'scoped memory for tpu_custom_call.1']
    #allocation5 [shape = 'u8[139264]{0}', space=vmem, size = 0x22000, scoped, tag = 'input window, operand 1, single buffered']
    #allocation6 [shape = 's32[1]{0}', space=sflag, size = 0x4, scoped, tag = 'scoped memory for tpu_custom_call.1']
    #allocation7 [shape = 'u8[4096]{0}', space=vmem, size = 0x1000, scoped, tag = 'output window, operand 0, single buffered']
    %8 = vsyncpa [#allocation3], 0
    %9 = vsyncpa [#allocation6], 0
    %10 = vsyncpa [#allocation4], 0
    // Predicated region
    $region2: #{tpu_custom_call.1} parent=1 // pred_check
      _
    $region3: #{tpu_custom_call.1} parent=1 // pred_check_branch
      %12 = sbr.rel (0) target = $region5
    $region4: #{tpu_custom_call.1} parent=1 // pred_region
      %s14 = ssub.s32 128, 128
      %15 = vsyncadd [#allocation3], %s14
      %s17 = sshll.u32 [#allocation2], 4
      %s18 = int_to_ptr.vmem [resolvable:$true] %s17
      %20 = dma.hbm_to_vmem [thread:$0]  %s0, 128, %s18, [#allocation3]
    $region5: #{tpu_custom_call.1} parent=1 // pred_fallthru
      _
    // Predicated region
    $region6: #{tpu_custom_call.1} parent=1 // pred_check
      _
    $region7: #{tpu_custom_call.1} parent=1 // pred_check_branch
      %22 = sbr.rel (0) target = $region9
    $region8: #{tpu_custom_call.1} parent=1 // pred_region
      %s24 = ssub.s32 4352, 4352
      %25 = vsyncadd [#allocation6], %s24
      %s26 = sshll.u32 [#allocation5], 4
      %s27 = int_to_ptr.vmem [resolvable:$true] %s26
      %32 = dma.hbm_to_vmem [thread:$0]  %s1, 4352, %s27, [#allocation6], 128, 128, 8
    $region9: #{tpu_custom_call.1} parent=1 // pred_fallthru
      _
    // Predicated region
    $region10: #{tpu_custom_call.1} parent=1 // pred_check
      _
    $region11: #{tpu_custom_call.1} parent=1 // pred_check_branch
      %34 = sbr.rel (0) target = $region13
    $region12: #{tpu_custom_call.1} parent=1 // pred_region
      _
    $region13: #{tpu_custom_call.1} parent=1 // pred_fallthru
      _
    // Predicated region
    $region14: #{tpu_custom_call.1} parent=1 // pred_check
      _
    $region15: #{tpu_custom_call.1} parent=1 // pred_check_branch
      %36 = sbr.rel (0) target = $region17
    $region16: #{tpu_custom_call.1} parent=1 // pred_region
      %37 = dma.done [#allocation3], 128
    $region17: #{tpu_custom_call.1} parent=1 // pred_fallthru
      _
    // Predicated region
    $region18: #{tpu_custom_call.1} parent=1 // pred_check
      _
    $region19: #{tpu_custom_call.1} parent=1 // pred_check_branch
      %39 = sbr.rel (0) target = $region21
    $region20: #{tpu_custom_call.1} parent=1 // pred_region
      %40 = dma.done [#allocation6], 4352
    $region21: #{tpu_custom_call.1} parent=1 // pred_fallthru
      _
    %v41 = vld [vmem:[#allocation2] sm:$0xff]
    %v42 = vld [vmem:[#allocation5] sm:$0xff]
    %v43 = vld [vmem:[#allocation5 + $0x8] sm:$0xff]
    %v44 = vld [vmem:[%s2] sm:$0x1]
    %v45 = vlaneseq
    %v46 = vshrl.u32 %v45, 7
    %v47 = vsub.s32 0, %v46
    %v48 = vrot.slane %v44, %v47
    %vm49 = vcmask 130048
    %v51 = vsel %vm49, %v41, 0
    %53 = vmatprep.subr.mxu0 0.0
    %54 = vmatpush1.msra.mxu0 %v42
    %55 = vmatprep.subr.mxu0 0.0
    %56 = vmatpush1.msra.mxu0 %v43
    %57 = vmatprep.subr.mxu0 0.0
    %58 = vmatpush1.msra.mxu0 0.0
    %59 = vmatprep.subr.mxu0 0.0
    %60 = vmatpush1.msra.mxu0 0.0
    %61 = vmatprep.subr.mxu0 0.0
    %62 = vmatpush1.msra.mxu0 0.0
    %63 = vmatprep.subr.mxu0 0.0
    %64 = vmatpush1.msra.mxu0 0.0
    %65 = vmatprep.subr.mxu0 0.0
    %66 = vmatpush1.msra.mxu0 0.0
    %67 = vmatprep.subr.mxu0 0.0
    %68 = vmatpush1.msra.mxu0 0.0
    %69 = vmatprep.subr.mxu0 0.0
    %70 = vmatpush1.msra.mxu0 0.0
    %71 = vmatprep.subr.mxu0 0.0
    %72 = vmatpush1.msra.mxu0 0.0
    %73 = vmatprep.subr.mxu0 0.0
    %74 = vmatpush1.msra.mxu0 0.0
    %75 = vmatprep.subr.mxu0 0.0
    %76 = vmatpush1.msra.mxu0 0.0
    %77 = vmatprep.subr.mxu0 0.0
    %78 = vmatpush1.msra.mxu0 0.0
    %79 = vmatprep.subr.mxu0 0.0
    %80 = vmatpush1.msra.mxu0 0.0
    %81 = vmatprep.subr.mxu0 0.0
    %82 = vmatpush1.msra.mxu0 0.0
    %83 = vmatprep.subr.mxu0 0.0
    %84 = vmatpush1.msra.mxu0 0.0
    %85 = vmatprep.subr.mxu0 0.0
    %86 = vmatpush1.msra.mxu0 0.0
    %87 = vmatprep.subr.mxu0 0.0
    %88 = vmatpush1.msra.mxu0 0.0
    %89 = vmatprep.subr.mxu0 0.0
    %90 = vmatpush1.msra.mxu0 0.0
    %91 = vmatprep.subr.mxu0 0.0
    %92 = vmatpush1.msra.mxu0 0.0
    %93 = vmatprep.subr.mxu0 0.0
    %94 = vmatpush1.msra.mxu0 0.0
    %95 = vmatprep.subr.mxu0 0.0
    %96 = vmatpush1.msra.mxu0 0.0
    %97 = vmatprep.subr.mxu0 0.0
    %98 = vmatpush1.msra.mxu0 0.0
    %99 = vmatprep.subr.mxu0 0.0
    %100 = vmatpush1.msra.mxu0 0.0
    %101 = vmatprep.subr.mxu0 0.0
    %102 = vmatpush1.msra.mxu0 0.0
    %103 = vmatprep.subr.mxu0 0.0
    %104 = vmatpush1.msra.mxu0 0.0
    %105 = vmatprep.subr.mxu0 0.0
    %106 = vmatpush1.msra.mxu0 0.0
    %107 = vmatprep.subr.mxu0 0.0
    %108 = vmatpush1.msra.mxu0 0.0
    %109 = vmatprep.subr.mxu0 0.0
    %110 = vmatpush1.msra.mxu0 0.0
    %111 = vmatprep.subr.mxu0 0.0
    %112 = vmatpush1.msra.mxu0 0.0
    %113 = vmatprep.subr.mxu0 0.0
    %114 = vmatpush1.msra.mxu0 0.0
    %115 = vmatprep.subr.mxu0 0.0
    %116 = vmatpush1.msra.mxu0 0.0
    %117 = vmatprep.mubr.f32.mxu0 0.0
    %118 = vmatmul.mubr.f32.gmra.mrb[0].mxu0 %v51
    %v119 = vpop.f32.mrb[0].mxu0
    %v120 = vadd.f32 %v48, %v119
    %v121 = vpop.f32.mrb[0].mxu0
    %122 = vdwg.mxu0
    %v123 = vmax.f32 %v120, 0.0
    %v124 = vld [vmem:[#allocation5 + $0x10] sm:$0xff]
    %v125 = vld [vmem:[#allocation5 + $0x18] sm:$0xff]
    %v126 = vld [vmem:[#allocation5 + $0x20] sm:$0xff]
    %v127 = vld [vmem:[#allocation5 + $0x28] sm:$0xff]
    %v128 = vld [vmem:[#allocation5 + $0x30] sm:$0xff]
    %v129 = vld [vmem:[#allocation5 + $0x38] sm:$0xff]
    %v130 = vld [vmem:[#allocation5 + $0x40] sm:$0xff]
    %v131 = vld [vmem:[#allocation5 + $0x48] sm:$0xff]
    %v132 = vld [vmem:[#allocation5 + $0x50] sm:$0xff]
    %v133 = vld [vmem:[#allocation5 + $0x58] sm:$0xff]
    %v134 = vld [vmem:[#allocation5 + $0x60] sm:$0xff]
    %v135 = vld [vmem:[#allocation5 + $0x68] sm:$0xff]
    %v136 = vld [vmem:[#allocation5 + $0x70] sm:$0xff]
    %v137 = vld [vmem:[#allocation5 + $0x78] sm:$0xff]
    %v138 = vld [vmem:[#allocation5 + $0x80] sm:$0xff]
    %v139 = vld [vmem:[#allocation5 + $0x88] sm:$0xff]
    %v140 = vld [vmem:[%s2 + $0x1] sm:$0x1]
    %v141 = vlaneseq
    %v142 = vshrl.u32 %v141, 7
    %v143 = vsub.s32 0, %v142
    %v144 = vrot.slane %v140, %v143
    %145 = vmatprep.subr.mxu0 0.0
    %146 = vmatpush1.msra.mxu0 %v124
    %147 = vmatprep.subr.mxu0 0.0
    %148 = vmatpush1.msra.mxu0 %v125
    %149 = vmatprep.subr.mxu0 0.0
    %150 = vmatpush1.msra.mxu0 %v126
    %151 = vmatprep.subr.mxu0 0.0
    %152 = vmatpush1.msra.mxu0 %v127
    %153 = vmatprep.subr.mxu0 0.0
    %154 = vmatpush1.msra.mxu0 %v128
    %155 = vmatprep.subr.mxu0 0.0
    %156 = vmatpush1.msra.mxu0 %v129
    %157 = vmatprep.subr.mxu0 0.0
    %158 = vmatpush1.msra.mxu0 %v130
    %159 = vmatprep.subr.mxu0 0.0
    %160 = vmatpush1.msra.mxu0 %v131
    %161 = vmatprep.subr.mxu0 0.0
    %162 = vmatpush1.msra.mxu0 %v132
    %163 = vmatprep.subr.mxu0 0.0
    %164 = vmatpush1.msra.mxu0 %v133
    %165 = vmatprep.subr.mxu0 0.0
    %166 = vmatpush1.msra.mxu0 %v134
    %167 = vmatprep.subr.mxu0 0.0
    %168 = vmatpush1.msra.mxu0 %v135
    %169 = vmatprep.subr.mxu0 0.0
    %170 = vmatpush1.msra.mxu0 %v136
    %171 = vmatprep.subr.mxu0 0.0
    %172 = vmatpush1.msra.mxu0 %v137
    %173 = vmatprep.subr.mxu0 0.0
    %174 = vmatpush1.msra.mxu0 %v138
    %175 = vmatprep.subr.mxu0 0.0
    %176 = vmatpush1.msra.mxu0 %v139
    %177 = vmatprep.subr.mxu0 0.0
    %178 = vmatpush1.msra.mxu0 0.0
    %179 = vmatprep.subr.mxu0 0.0
    %180 = vmatpush1.msra.mxu0 0.0
    %181 = vmatprep.subr.mxu0 0.0
    %182 = vmatpush1.msra.mxu0 0.0
    %183 = vmatprep.subr.mxu0 0.0
    %184 = vmatpush1.msra.mxu0 0.0
    %185 = vmatprep.subr.mxu0 0.0
    %186 = vmatpush1.msra.mxu0 0.0
    %187 = vmatprep.subr.mxu0 0.0
    %188 = vmatpush1.msra.mxu0 0.0
    %189 = vmatprep.subr.mxu0 0.0
    %190 = vmatpush1.msra.mxu0 0.0
    %191 = vmatprep.subr.mxu0 0.0
    %192 = vmatpush1.msra.mxu0 0.0
    %193 = vmatprep.subr.mxu0 0.0
    %194 = vmatpush1.msra.mxu0 0.0
    %195 = vmatprep.subr.mxu0 0.0
    %196 = vmatpush1.msra.mxu0 0.0
    %197 = vmatprep.subr.mxu0 0.0
    %198 = vmatpush1.msra.mxu0 0.0
    %199 = vmatprep.subr.mxu0 0.0
    %200 = vmatpush1.msra.mxu0 0.0
    %201 = vmatprep.subr.mxu0 0.0
    %202 = vmatpush1.msra.mxu0 0.0
    %203 = vmatprep.subr.mxu0 0.0
    %204 = vmatpush1.msra.mxu0 0.0
    %205 = vmatprep.subr.mxu0 0.0
    %206 = vmatpush1.msra.mxu0 0.0
    %207 = vmatprep.subr.mxu0 0.0
    %208 = vmatpush1.msra.mxu0 0.0
    %209 = vmatprep.mubr.f32.mxu0 0.0
    %210 = vmatmul.mubr.f32.gmra.mrb[0].mxu0 %v123
    %v211 = vpop.f32.mrb[0].mxu0
    %v212 = vadd.f32 %v144, %v211
    %v213 = vpop.f32.mrb[0].mxu0
    %214 = vdwg.mxu0
    %v215 = vmax.f32 %v212, 0.0
    %v216 = vld [vmem:[#allocation5 + $0x90] sm:$0xff]
    %v217 = vld [vmem:[#allocation5 + $0x98] sm:$0xff]
    %v218 = vld [vmem:[#allocation5 + $0xa0] sm:$0xff]
    %v219 = vld [vmem:[#allocation5 + $0xa8] sm:$0xff]
    %v220 = vld [vmem:[#allocation5 + $0xb0] sm:$0xff]
    %v221 = vld [vmem:[#allocation5 + $0xb8] sm:$0xff]
    %v222 = vld [vmem:[#allocation5 + $0xc0] sm:$0xff]
    %v223 = vld [vmem:[#allocation5 + $0xc8] sm:$0xff]
    %v224 = vld [vmem:[#allocation5 + $0xd0] sm:$0xff]
    %v225 = vld [vmem:[#allocation5 + $0xd8] sm:$0xff]
    %v226 = vld [vmem:[#allocation5 + $0xe0] sm:$0xff]
    %v227 = vld [vmem:[#allocation5 + $0xe8] sm:$0xff]
    %v228 = vld [vmem:[#allocation5 + $0xf0] sm:$0xff]
    %v229 = vld [vmem:[#allocation5 + $0xf8] sm:$0xff]
    %v230 = vld [vmem:[#allocation5 + $0x100] sm:$0xff]
    %v231 = vld [vmem:[#allocation5 + $0x108] sm:$0xff]
    %v232 = vld [vmem:[%s2 + $0x2] sm:$0x1]
    %v233 = vlaneseq
    %v234 = vshrl.u32 %v233, 7
    %v235 = vsub.s32 0, %v234
    %v236 = vrot.slane %v232, %v235
    %237 = vmatprep.subr.mxu0 0.0
    %238 = vmatpush1.msra.mxu0 %v216
    %239 = vmatprep.subr.mxu0 0.0
    %240 = vmatpush1.msra.mxu0 %v217
    %241 = vmatprep.subr.mxu0 0.0
    %242 = vmatpush1.msra.mxu0 %v218
    %243 = vmatprep.subr.mxu0 0.0
    %244 = vmatpush1.msra.mxu0 %v219
    %245 = vmatprep.subr.mxu0 0.0
    %246 = vmatpush1.msra.mxu0 %v220
    %247 = vmatprep.subr.mxu0 0.0
    %248 = vmatpush1.msra.mxu0 %v221
    %249 = vmatprep.subr.mxu0 0.0
    %250 = vmatpush1.msra.mxu0 %v222
    %251 = vmatprep.subr.mxu0 0.0
    %252 = vmatpush1.msra.mxu0 %v223
    %253 = vmatprep.subr.mxu0 0.0
    %254 = vmatpush1.msra.mxu0 %v224
    %255 = vmatprep.subr.mxu0 0.0
    %256 = vmatpush1.msra.mxu0 %v225
    %257 = vmatprep.subr.mxu0 0.0
    %258 = vmatpush1.msra.mxu0 %v226
    %259 = vmatprep.subr.mxu0 0.0
    %260 = vmatpush1.msra.mxu0 %v227
    %261 = vmatprep.subr.mxu0 0.0
    %262 = vmatpush1.msra.mxu0 %v228
    %263 = vmatprep.subr.mxu0 0.0
    %264 = vmatpush1.msra.mxu0 %v229
    %265 = vmatprep.subr.mxu0 0.0
    %266 = vmatpush1.msra.mxu0 %v230
    %267 = vmatprep.subr.mxu0 0.0
    %268 = vmatpush1.msra.mxu0 %v231
    %269 = vmatprep.subr.mxu0 0.0
    %270 = vmatpush1.msra.mxu0 0.0
    %271 = vmatprep.subr.mxu0 0.0
    %272 = vmatpush1.msra.mxu0 0.0
    %273 = vmatprep.subr.mxu0 0.0
    %274 = vmatpush1.msra.mxu0 0.0
    %275 = vmatprep.subr.mxu0 0.0
    %276 = vmatpush1.msra.mxu0 0.0
    %277 = vmatprep.subr.mxu0 0.0
    %278 = vmatpush1.msra.mxu0 0.0
    %279 = vmatprep.subr.mxu0 0.0
    %280 = vmatpush1.msra.mxu0 0.0
    %281 = vmatprep.subr.mxu0 0.0
    %282 = vmatpush1.msra.mxu0 0.0
    %283 = vmatprep.subr.mxu0 0.0
    %284 = vmatpush1.msra.mxu0 0.0
    %285 = vmatprep.subr.mxu0 0.0
    %286 = vmatpush1.msra.mxu0 0.0
    %287 = vmatprep.subr.mxu0 0.0
    %288 = vmatpush1.msra.mxu0 0.0
    %289 = vmatprep.subr.mxu0 0.0
    %290 = vmatpush1.msra.mxu0 0.0
    %291 = vmatprep.subr.mxu0 0.0
    %292 = vmatpush1.msra.mxu0 0.0
    %293 = vmatprep.subr.mxu0 0.0
    %294 = vmatpush1.msra.mxu0 0.0
    %295 = vmatprep.subr.mxu0 0.0
    %296 = vmatpush1.msra.mxu0 0.0
    %297 = vmatprep.subr.mxu0 0.0
    %298 = vmatpush1.msra.mxu0 0.0
    %299 = vmatprep.subr.mxu0 0.0
    %300 = vmatpush1.msra.mxu0 0.0
    %301 = vmatprep.mubr.f32.mxu0 0.0
    %302 = vmatmul.mubr.f32.gmra.mrb[0].mxu0 %v215
    %v303 = vpop.f32.mrb[0].mxu0
    %v304 = vadd.f32 %v236, %v303
    %v305 = vpop.f32.mrb[0].mxu0
    %306 = vdwg.mxu0
    %v307 = vlaneseq
    %v308 = vand.u32 %v307, 127
    %vm309 = vcmp.lt.s32.totalorder %v308, 8
    %v310 = vsel %vm309, %v304, 0.0
    %311 = vadd.xlane.f32.xlu0 %v310
    %v312 = vpop.xlane.xlu0 %311
    %v313 = vmul.f32 %v312, 0.125
    %v314 = vsub.f32 %v304, %v313
    %316 = vset.pattern.permute.xlu0 8
    %317 = vperm.xlu0 %316, %v314
    %v318 = vpop.permute.xlu0 %317
    %v320 = vadd.f32 %v304, %v318
    %321 = vst [vmem:[#allocation7] sm:$0xff] %v320
    // Predicated region
    $region22: #{tpu_custom_call.1} parent=1 // pred_check
      _
    $region23: #{tpu_custom_call.1} parent=1 // pred_check_branch
      %323 = sbr.rel (0) target = $region25
    $region24: #{tpu_custom_call.1} parent=1 // pred_region
      %s325 = ssub.s32 128, 128
      %326 = vsyncadd [#allocation4], %s325
      %s328 = sshll.u32 [#allocation7], 4
      %s329 = int_to_ptr.vmem [resolvable:$true] %s328
      %331 = dma.vmem_to_hbm [thread:$0]  %s329, 128, %s3, [#allocation4]
    $region25: #{tpu_custom_call.1} parent=1 // pred_fallthru
      _
    // Predicated region
    $region26: #{tpu_custom_call.1} parent=1 // pred_check
      _
    $region27: #{tpu_custom_call.1} parent=1 // pred_check_branch
      %333 = sbr.rel (0) target = $region29
    $region28: #{tpu_custom_call.1} parent=1 // pred_region
      %334 = dma.done [#allocation4], 128
    $region29: #{tpu_custom_call.1} parent=1 // pred_fallthru
      _
    %335 = vsyncpa [#allocation3], 1
    %336 = vsyncpa [#allocation6], 1
    %337 = vsyncpa [#allocation4], 1

</llo_original>
